<compile_context>
chip_gen: v5e
topology: v5e:2x2
jax: 0.10.0
libtpu: 0.0.40
codegen_flags: <defaults>
</compile_context>

<pallas_src>
import jax
import jax.numpy as jnp
from jax.experimental import pallas as pl
from jax.experimental.pallas import tpu as pltpu

_IN = 24          # fc1 in_features
_HID = 32         # fc1 out_features / fc2 in_features
_OUT = 64         # fc2 out_features
_PACK = 2         # batch rows packed per 128-lane output row
_KP = _PACK * _IN    # 48  : packed contraction dim
_NP = _PACK * _OUT   # 128 : packed (lane-dense) output dim
_TB2 = 4096          # packed-row tile for the pipelined (large-batch) path


def _fused_linear_kernel(x_ref, w_ref, b_ref, o_ref):
    # (tb2, 48) @ (48, 128) + (1, 128) -> (tb2, 128); f32 accumulation on MXU.
    y = jnp.dot(x_ref[...], w_ref[...], preferred_element_type=jnp.float32)
    o_ref[...] = (y + b_ref[...]).astype(o_ref.dtype)


@jax.jit
def two_layer_linear(x, w1_t, b1, w2_t, b2):
    """x: (B, 24) f32; w1_t: (24, 32); b1: (1, 32); w2_t: (32, 64); b2: (1, 64).

    Computes (x @ w1_t + b1) @ w2_t + b2  ==  fc2(fc1(x)) of the PyTorch module
    (weights stored pre-transposed), via a single fused matmul.
    """
    batch, in_f = x.shape
    assert in_f == _IN and w2_t.shape[1] == _OUT

    # ---- algebraic fusion of the two linear layers (tiny, one-time XLA ops) ----
    w_fused = w1_t @ w2_t                 # (24, 64)
    b_fused = b1 @ w2_t + b2              # (1, 64)

    # ---- 2-row packing: block-diagonal weight, duplicated bias ----
    w_bd = (jnp.zeros((_KP, _NP), jnp.float32)
            .at[:_IN, :_OUT].set(w_fused)
            .at[_IN:, _OUT:].set(w_fused))            # (48, 128)
    b_bd = jnp.concatenate([b_fused, b_fused], axis=1)  # (1, 128)

    # ---- batch padding: even for packing; tile multiple for large batches ----
    if batch <= _PACK * _TB2:
        batch_pad = ((batch + _PACK - 1) // _PACK) * _PACK
        tb2 = batch_pad // _PACK          # single block (shape == full dims)
    else:
        step = _PACK * _TB2
        batch_pad = ((batch + step - 1) // step) * step
        tb2 = _TB2
    x_p = x if batch_pad == batch else jnp.pad(x, ((0, batch_pad - batch), (0, 0)))

    rows2 = batch_pad // _PACK
    x2 = x_p.reshape(rows2, _KP)          # free row-major reshape
    grid = (rows2 // tb2,)

    cost = pl.CostEstimate(
        flops=2 * rows2 * _KP * _NP,
        transcendentals=0,
        bytes_accessed=(rows2 * (_KP + _NP) * 4 + _KP * _NP * 4 + _NP * 4),
    )

    out2 = pl.pallas_call(
        _fused_linear_kernel,
        out_shape=jax.ShapeDtypeStruct((rows2, _NP), jnp.float32),
        grid_spec=pltpu.PrefetchScalarGridSpec(
            num_scalar_prefetch=0,
            grid=grid,
            in_specs=[
                pl.BlockSpec((tb2, _KP), lambda i: (i, 0)),   # packed x tile
                pl.BlockSpec((_KP, _NP), lambda i: (0, 0)),   # fused W (VMEM-resident)
                pl.BlockSpec((1, _NP), lambda i: (0, 0)),     # fused b (VMEM-resident)
            ],
            out_specs=pl.BlockSpec((tb2, _NP), lambda i: (i, 0)),
        ),
        compiler_params=pltpu.CompilerParams(
            dimension_semantics=("parallel",),   # shard batch tiles over TCs (v7x)
        ),
        cost_estimate=cost,
    )(x2, w_bd, b_bd)

    out = out2.reshape(batch_pad, _OUT)   # free row-major reshape back
    return out[:batch] if batch_pad != batch else out


def _init_linear_params(key, in_features, out_features):
    """Deterministic init mirroring torch.nn.Linear defaults: U(-1/sqrt(fan_in), ...)."""
    k_w, k_b = jax.random.split(key)
    bound = 1.0 / jnp.sqrt(jnp.float32(in_features))
    # PyTorch weight shape is (out, in); we store it transposed as (in, out).
    w_t = jax.random.uniform(
        k_w, (in_features, out_features), dtype=jnp.float32, minval=-bound, maxval=bound
    )
    b = jax.random.uniform(
        k_b, (1, out_features), dtype=jnp.float32, minval=-bound, maxval=bound
    )
    return w_t, b


if __name__ == "__main__":
    key = jax.random.PRNGKey(0)
    k_x, k_fc1, k_fc2 = jax.random.split(key, 3)

    batch = 8
    x = jax.random.normal(k_x, (batch, _IN), dtype=jnp.float32)

    w1_t, b1 = _init_linear_params(k_fc1, _IN, _HID)
    w2_t, b2 = _init_linear_params(k_fc2, _HID, _OUT)

    out = two_layer_linear(x, w1_t, b1, w2_t, b2)
    out = jax.block_until_ready(out)

    # Pure-JAX two-step reference (tolerance absorbs the fp32 reassociation
    # introduced by the algebraic weight fusion).
    ref = (x @ w1_t + b1) @ w2_t + b2
    assert out.shape == (batch, _OUT)
    assert jnp.allclose(out, ref, atol=1e-4, rtol=1e-4), "mismatch vs reference"

    print("KERNEL_OK")
</pallas_src>

<mosaic_0001>
module attributes {stable_mosaic.version = 11 : i64} {
  func.func @_fused_linear_kernel(%arg0: i32, %arg1: memref<4x48xf32, #tpu.memory_space<vmem>>, %arg2: memref<48x128xf32, #tpu.memory_space<vmem>>, %arg3: memref<1x128xf32, #tpu.memory_space<vmem>>, %arg4: memref<4x128xf32, #tpu.memory_space<vmem>>) attributes {dimension_semantics = [#tpu.dimension_semantics<parallel>], iteration_bounds = array<i64: 1>, scalar_prefetch = 0 : i64, scratch_operands = 0 : i64, tpu.core_type = #tpu.core_type<tc>, window_params = [{transform_indices = @transform_0, window_bounds = array<i64: 4, 48>}, {pipeline_mode = #tpu.pipeline_mode<synchronous>, transform_indices = @transform_1, window_bounds = array<i64: 48, 128>}, {pipeline_mode = #tpu.pipeline_mode<synchronous>, transform_indices = @transform_2, window_bounds = array<i64: 1, 128>}, {transform_indices = @transform_3, window_bounds = array<i64: 4, 128>}]} {
    %c0 = arith.constant 0 : index
    %c0_0 = arith.constant 0 : index
    %0 = vector.load %arg1[%c0, %c0_0] : memref<4x48xf32, #tpu.memory_space<vmem>>, vector<4x48xf32>
    %c0_1 = arith.constant 0 : index
    %c0_2 = arith.constant 0 : index
    %1 = vector.load %arg2[%c0_1, %c0_2] : memref<48x128xf32, #tpu.memory_space<vmem>>, vector<48x128xf32>
    %cst = arith.constant dense<0.000000e+00> : vector<4x128xf32>
    %2 = tpu.matmul %0, %1, %cst {dimension_numbers = #tpu.dot_dimension_numbers<[1], [0], [0], [1], [0, 0, 1, 1], [], []>} : vector<4x48xf32>, vector<48x128xf32>, vector<4x128xf32> -> vector<4x128xf32>
    %c0_3 = arith.constant 0 : index
    %c0_4 = arith.constant 0 : index
    %3 = vector.load %arg3[%c0_3, %c0_4] : memref<1x128xf32, #tpu.memory_space<vmem>>, vector<1x128xf32>
    %4 = vector.broadcast %3 : vector<1x128xf32> to vector<4x128xf32>
    %5 = arith.addf %2, %4 : vector<4x128xf32>
    %c0_5 = arith.constant 0 : index
    %c0_6 = arith.constant 0 : index
    %6 = vector.load %arg4[%c0_5, %c0_6] : memref<4x128xf32, #tpu.memory_space<vmem>>, vector<4x128xf32>
    tpu.vector_store %arg4[%c0_5, %c0_6], %5 {strides = array<i32>} : memref<4x128xf32, #tpu.memory_space<vmem>>, vector<4x128xf32>,
    return
  }
  func.func @transform_0(%arg0: i32) -> (i32, i32) {
    %c0_i32 = arith.constant 0 : i32
    %c0_i32_0 = arith.constant 0 : i32
    return %arg0, %c0_i32 : i32, i32
  }
  func.func @transform_1(%arg0: i32) -> (i32, i32) {
    %c0_i32 = arith.constant 0 : i32
    %c0_i32_0 = arith.constant 0 : i32
    %c0_i32_1 = arith.constant 0 : i32
    return %c0_i32, %c0_i32_0 : i32, i32
  }
  func.func @transform_2(%arg0: i32) -> (i32, i32) {
    %c0_i32 = arith.constant 0 : i32
    %c0_i32_0 = arith.constant 0 : i32
    %c0_i32_1 = arith.constant 0 : i32
    return %c0_i32, %c0_i32_0 : i32, i32
  }
  func.func @transform_3(%arg0: i32) -> (i32, i32) {
    %c0_i32 = arith.constant 0 : i32
    %c0_i32_0 = arith.constant 0 : i32
    return %arg0, %c0_i32 : i32, i32
  }
}

</mosaic_0001>

<llo_original>
// kernel: two_layer_linear.1
$region0: #{two_layer_linear.1}
  #allocation0 [shape = 'u32[]', space=smem, size = 0x4, offset = 0x4, fixed_abs, tag = 'smem constant byte address 0x4 - core index']
  #allocation1 [shape = 'u32[72,128]{1,0:T(1,128)}', space=vmem, size = 0x9000, scoped, tag = 'internal scratch']
  %s0 = inlined_call_operand.vmem [shape: f32[4,48], index: 0, kind: input, shape index: {}]
  %s1 = inlined_call_operand.vmem [shape: f32[48,128], index: 1, kind: input, shape index: {}]
  %s2 = inlined_call_operand.vmem [shape: f32[1,128], index: 2, kind: input, shape index: {}]
  %s3 = inlined_call_operand.vmem [shape: f32[4,128], index: 3, kind: output, shape index: {}]
  %s4 = sld [smem:[#allocation0]]
  $region22: #{two_layer_linear.1} parent=0
    _
  %s6 = ssub.s32 1, %s4
  %s7 = scalar_select 0, %s6, %s4
  // Predicated region
  $region2: #{two_layer_linear.1} parent=0 // pred_check
    _
  $region3: #{two_layer_linear.1} parent=0 // pred_check_branch
    %9 = sbr.rel (0) target = $region5
  $region4: #{two_layer_linear.1} parent=0 // pred_region
    _
  $region5: #{two_layer_linear.1} parent=0 // pred_fallthru
    _
  // Predicated region
  $region6: #{two_layer_linear.1} parent=0 // pred_check
    _
  $region7: #{two_layer_linear.1} parent=0 // pred_check_branch
    %11 = sbr.rel (0) target = $region9
  $region8: #{two_layer_linear.1} parent=0 // pred_region
    _
  $region9: #{two_layer_linear.1} parent=0 // pred_fallthru
    _
  // Predicated region
  $region10: #{two_layer_linear.1} parent=0 // pred_check
    _
  $region11: #{two_layer_linear.1} parent=0 // pred_check_branch
    %13 = sbr.rel (0) target = $region13
  $region12: #{two_layer_linear.1} parent=0 // pred_region
    _
  $region13: #{two_layer_linear.1} parent=0 // pred_fallthru
    _
  %v14 = vld [vmem:[%s0] sm:$0xf]
  %v15 = vld [vmem:[%s1] sm:$0xff]
  %v16 = vld [vmem:[%s1 + $0x8] sm:$0xff]
  %v17 = vld [vmem:[%s1 + $0x10] sm:$0xff]
  %v18 = vld [vmem:[%s1 + $0x18] sm:$0xff]
  %v19 = vld [vmem:[%s1 + $0x20] sm:$0xff]
  %v20 = vld [vmem:[%s1 + $0x28] sm:$0xff]
  %v21 = vld [vmem:[%s2] sm:$0x1]
  %v23 = vperm.slane %v21, 0
  %vm25 = vcmask 392192
  %v27 = vsel %vm25, %v14, 0
  %29 = vmatpush.msra.mxu0 0.0
  %30 = vmatpush.msra.mxu0 0.0
  %31 = vmatpush.msra.mxu0 0.0
  %32 = vmatpush.msra.mxu0 0.0
  %33 = vmatpush.msra.mxu0 0.0
  %34 = vmatpush.msra.mxu0 0.0
  %35 = vmatpush.msra.mxu0 0.0
  %36 = vmatpush.msra.mxu0 0.0
  %37 = vmatpush.msra.mxu0 0.0
  %38 = vmatpush.msra.mxu0 0.0
  %39 = vmatpush.msra.mxu0 %v20
  %40 = vmatpush.msra.mxu0 %v19
  %41 = vmatpush.msra.mxu0 %v18
  %42 = vmatpush.msra.mxu0 %v17
  %43 = vmatpush.msra.mxu0 %v16
  %44 = vmatpush.msra.mxu0 %v15
  %45 = vmatmul.f32.gmra.mxu0 %v27
  %v46 = vpop.f32.mrf.mxu0
  %v47 = vadd.f32 %v23, %v46
  %48 = vdwg.mxu0
  %49 = vst [vmem:[%s3] sm:$0xf] %v47
  // Predicated region
  $region14: #{two_layer_linear.1} parent=0 // pred_check
    _
  $region15: #{two_layer_linear.1} parent=0 // pred_check_branch
    %51 = sbr.rel (0) target = $region17
  $region16: #{two_layer_linear.1} parent=0 // pred_region
    _
  $region17: #{two_layer_linear.1} parent=0 // pred_fallthru
    _
  // Predicated region
  $region18: #{two_layer_linear.1} parent=0 // pred_check
    _
  $region19: #{two_layer_linear.1} parent=0 // pred_check_branch
    %53 = sbr.rel (0) target = $region21
  $region20: #{two_layer_linear.1} parent=0 // pred_region
    _
  $region21: #{two_layer_linear.1} parent=0 // pred_fallthru
    _

</llo_original>
